<compile_context>
chip_gen: v7x
topology: tpu7x:2x2x1
jax: 0.10.0
libtpu: 0.0.40
codegen_flags: <defaults>
</compile_context>

<pallas_src>
import jax
import jax.numpy as jnp
from jax.experimental import pallas as pl
from jax.experimental.pallas import tpu as pltpu

IN, HID, OUT = 2, 4, 2

# Packed-parameter layout (f32[22]):
#   [ 0: 8)  W1 (2,4) row-major   -> W1[i, j] at 4*i + j
#   [ 8:12)  b1 (4,)
#   [12:20)  W2 (4,2) row-major   -> W2[i, k] at 12 + 2*i + k
#   [20:22)  b2 (2,)
_W1_OFF, _B1_OFF, _W2_OFF, _B2_OFF = 0, 8, 12, 20


def xor_mlp_kernel(params_ref, xt_ref, o_ref):
    """params_ref: SMEM f32[22]; xt_ref: VMEM (2, T); o_ref: VMEM (2, T)."""
    x0 = xt_ref[0:1, :]            # (1, T) feature 0, batch on lanes
    x1 = xt_ref[1:2, :]            # (1, T) feature 1

    # Hidden layer: h_j = relu(W1[0,j]*x0 + W1[1,j]*x1 + b1[j])  -- pure VPU FMAs.
    h = []
    for j in range(HID):
        hj = (x0 * params_ref[_W1_OFF + j]
              + x1 * params_ref[_W1_OFF + HID + j]
              + params_ref[_B1_OFF + j])
        h.append(jnp.maximum(hj, 0.0))

    # Output layer: l_k = sum_i W2[i,k]*h_i + b2[k]  -- pure VPU FMAs.
    logits = []
    for k in range(OUT):
        lk = h[0] * params_ref[_W2_OFF + k]
        for i in range(1, HID):
            lk = lk + h[i] * params_ref[_W2_OFF + OUT * i + k]
        logits.append(lk + params_ref[_B2_OFF + k])

    # 2-class log-softmax, elementwise (no lane-axis reductions):
    #   out0 = -softplus(d), out1 = d - softplus(d), with d = l1 - l0 and
    #   softplus(d) = max(d, 0) + log1p(exp(-|d|))  (numerically stable).
    d = logits[1] - logits[0]
    sp = jnp.maximum(d, 0.0) + jnp.log1p(jnp.exp(-jnp.abs(d)))
    o_ref[0:1, :] = (-sp).astype(o_ref.dtype)
    o_ref[1:2, :] = (d - sp).astype(o_ref.dtype)


def _round_up(n, m):
    return ((n + m - 1) // m) * m


def xor_model_forward(x, w1, b1, w2, b2, *, max_lane_tile=2048):
    """Forward pass of XORModel.

    x: (B, 2) f32.  w1: (2, 4), b1: (1, 4), w2: (4, 2), b2: (1, 2)
    (weights stored transposed relative to PyTorch, i.e. y = x @ W + b).
    Returns (B, 2) log-probabilities (matches F.log_softmax(dim=1)).
    """
    B = x.shape[0]
    # Pad batch to a lane-dense width; tile the lane axis for large batches.
    Bp = _round_up(max(B, 128), 128)
    if Bp > max_lane_tile:
        Bp = _round_up(Bp, max_lane_tile)
        tile = max_lane_tile
    else:
        tile = Bp

    params = jnp.concatenate(
        [w1.reshape(-1), b1.reshape(-1), w2.reshape(-1), b2.reshape(-1)]
    ).astype(jnp.float32)                                        # f32[22] -> SMEM

    xt = jnp.zeros((IN, Bp), jnp.float32).at[:, :B].set(x.T.astype(jnp.float32))

    out_t = pl.pallas_call(
        xor_mlp_kernel,
        out_shape=jax.ShapeDtypeStruct((OUT, Bp), jnp.float32),
        grid_spec=pltpu.PrefetchScalarGridSpec(
            num_scalar_prefetch=1,                     # packed params -> SMEM
            grid=(Bp // tile,),
            in_specs=[pl.BlockSpec((IN, tile), lambda i, _params: (0, i))],
            out_specs=pl.BlockSpec((OUT, tile), lambda i, _params: (0, i)),
        ),
        compiler_params=pltpu.CompilerParams(
            dimension_semantics=("parallel",)),
    )(params, xt)

    return out_t[:, :B].T


if __name__ == "__main__":
    key = jax.random.PRNGKey(0)
    k_x, k_w1, k_b1, k_w2, k_b2 = jax.random.split(key, 5)

    B = 8  # batch

    # Deterministic "Kaiming-uniform-ish" init (matches nn.Linear shapes, not values).
    bound1 = 1.0 / (IN ** 0.5)
    bound2 = 1.0 / (HID ** 0.5)
    w1 = jax.random.uniform(k_w1, (IN, HID), jnp.float32, -bound1, bound1)
    b1 = jax.random.uniform(k_b1, (1, HID), jnp.float32, -bound1, bound1)
    w2 = jax.random.uniform(k_w2, (HID, OUT), jnp.float32, -bound2, bound2)
    b2 = jax.random.uniform(k_b2, (1, OUT), jnp.float32, -bound2, bound2)

    # XOR-style binary inputs plus a couple of random rows.
    x = jnp.concatenate(
        [
            jnp.array([[0.0, 0.0], [0.0, 1.0], [1.0, 0.0], [1.0, 1.0]], jnp.float32),
            jax.random.uniform(k_x, (B - 4, IN), jnp.float32),
        ],
        axis=0,
    )

    out = xor_model_forward(x, w1, b1, w2, b2)
    out = jax.block_until_ready(out)

    # Reference check in plain JAX.
    h_ref = jnp.maximum(x @ w1 + b1, 0.0)
    logits_ref = h_ref @ w2 + b2
    ref = jax.nn.log_softmax(logits_ref, axis=-1)
    assert out.shape == (B, OUT)
    assert jnp.allclose(out, ref, atol=1e-5, rtol=1e-5), (out, ref)

    print("KERNEL_OK")
</pallas_src>

<mosaic_0001>
module attributes {stable_mosaic.version = 11 : i64} {
  func.func @xor_mlp_kernel(%arg0: i32, %arg1: memref<22xf32, #tpu.memory_space<smem>>, %arg2: memref<2x128xf32, #tpu.memory_space<vmem>>, %arg3: memref<2x128xf32, #tpu.memory_space<vmem>>) attributes {dimension_semantics = [#tpu.dimension_semantics<parallel>], iteration_bounds = array<i64: 1>, scalar_prefetch = 1 : i64, scratch_operands = 0 : i64, tpu.core_type = #tpu.core_type<tc>, window_params = [{transform_indices = @transform_0, window_bounds = array<i64: 2, 128>}, {transform_indices = @transform_1, window_bounds = array<i64: 2, 128>}]} {
    %c0 = arith.constant 0 : index
    %c0_0 = arith.constant 0 : index
    %0 = vector.load %arg2[%c0, %c0_0] : memref<2x128xf32, #tpu.memory_space<vmem>>, vector<1x128xf32>
    %c1 = arith.constant 1 : index
    %c0_1 = arith.constant 0 : index
    %1 = vector.load %arg2[%c1, %c0_1] : memref<2x128xf32, #tpu.memory_space<vmem>>, vector<1x128xf32>
    %c0_2 = arith.constant 0 : index
    %2 = memref.load %arg1[%c0_2] : memref<22xf32, #tpu.memory_space<smem>>
    %3 = vector.broadcast %2 : f32 to vector<1x128xf32>
    %4 = arith.mulf %0, %3 : vector<1x128xf32>
    %c4 = arith.constant 4 : index
    %5 = memref.load %arg1[%c4] : memref<22xf32, #tpu.memory_space<smem>>
    %6 = vector.broadcast %5 : f32 to vector<1x128xf32>
    %7 = arith.mulf %1, %6 : vector<1x128xf32>
    %8 = arith.addf %4, %7 : vector<1x128xf32>
    %c8 = arith.constant 8 : index
    %9 = memref.load %arg1[%c8] : memref<22xf32, #tpu.memory_space<smem>>
    %10 = vector.broadcast %9 : f32 to vector<1x128xf32>
    %11 = arith.addf %8, %10 : vector<1x128xf32>
    %cst = arith.constant 0.000000e+00 : f32
    %12 = vector.broadcast %cst : f32 to vector<1x128xf32>
    %13 = arith.maximumf %11, %12 : vector<1x128xf32>
    %c1_3 = arith.constant 1 : index
    %14 = memref.load %arg1[%c1_3] : memref<22xf32, #tpu.memory_space<smem>>
    %15 = vector.broadcast %14 : f32 to vector<1x128xf32>
    %16 = arith.mulf %0, %15 : vector<1x128xf32>
    %c5 = arith.constant 5 : index
    %17 = memref.load %arg1[%c5] : memref<22xf32, #tpu.memory_space<smem>>
    %18 = vector.broadcast %17 : f32 to vector<1x128xf32>
    %19 = arith.mulf %1, %18 : vector<1x128xf32>
    %20 = arith.addf %16, %19 : vector<1x128xf32>
    %c9 = arith.constant 9 : index
    %21 = memref.load %arg1[%c9] : memref<22xf32, #tpu.memory_space<smem>>
    %22 = vector.broadcast %21 : f32 to vector<1x128xf32>
    %23 = arith.addf %20, %22 : vector<1x128xf32>
    %cst_4 = arith.constant 0.000000e+00 : f32
    %24 = vector.broadcast %cst_4 : f32 to vector<1x128xf32>
    %25 = arith.maximumf %23, %24 : vector<1x128xf32>
    %c2 = arith.constant 2 : index
    %26 = memref.load %arg1[%c2] : memref<22xf32, #tpu.memory_space<smem>>
    %27 = vector.broadcast %26 : f32 to vector<1x128xf32>
    %28 = arith.mulf %0, %27 : vector<1x128xf32>
    %c6 = arith.constant 6 : index
    %29 = memref.load %arg1[%c6] : memref<22xf32, #tpu.memory_space<smem>>
    %30 = vector.broadcast %29 : f32 to vector<1x128xf32>
    %31 = arith.mulf %1, %30 : vector<1x128xf32>
    %32 = arith.addf %28, %31 : vector<1x128xf32>
    %c10 = arith.constant 10 : index
    %33 = memref.load %arg1[%c10] : memref<22xf32, #tpu.memory_space<smem>>
    %34 = vector.broadcast %33 : f32 to vector<1x128xf32>
    %35 = arith.addf %32, %34 : vector<1x128xf32>
    %cst_5 = arith.constant 0.000000e+00 : f32
    %36 = vector.broadcast %cst_5 : f32 to vector<1x128xf32>
    %37 = arith.maximumf %35, %36 : vector<1x128xf32>
    %c3 = arith.constant 3 : index
    %38 = memref.load %arg1[%c3] : memref<22xf32, #tpu.memory_space<smem>>
    %39 = vector.broadcast %38 : f32 to vector<1x128xf32>
    %40 = arith.mulf %0, %39 : vector<1x128xf32>
    %c7 = arith.constant 7 : index
    %41 = memref.load %arg1[%c7] : memref<22xf32, #tpu.memory_space<smem>>
    %42 = vector.broadcast %41 : f32 to vector<1x128xf32>
    %43 = arith.mulf %1, %42 : vector<1x128xf32>
    %44 = arith.addf %40, %43 : vector<1x128xf32>
    %c11 = arith.constant 11 : index
    %45 = memref.load %arg1[%c11] : memref<22xf32, #tpu.memory_space<smem>>
    %46 = vector.broadcast %45 : f32 to vector<1x128xf32>
    %47 = arith.addf %44, %46 : vector<1x128xf32>
    %cst_6 = arith.constant 0.000000e+00 : f32
    %48 = vector.broadcast %cst_6 : f32 to vector<1x128xf32>
    %49 = arith.maximumf %47, %48 : vector<1x128xf32>
    %c12 = arith.constant 12 : index
    %50 = memref.load %arg1[%c12] : memref<22xf32, #tpu.memory_space<smem>>
    %51 = vector.broadcast %50 : f32 to vector<1x128xf32>
    %52 = arith.mulf %13, %51 : vector<1x128xf32>
    %c14 = arith.constant 14 : index
    %53 = memref.load %arg1[%c14] : memref<22xf32, #tpu.memory_space<smem>>
    %54 = vector.broadcast %53 : f32 to vector<1x128xf32>
    %55 = arith.mulf %25, %54 : vector<1x128xf32>
    %56 = arith.addf %52, %55 : vector<1x128xf32>
    %c16 = arith.constant 16 : index
    %57 = memref.load %arg1[%c16] : memref<22xf32, #tpu.memory_space<smem>>
    %58 = vector.broadcast %57 : f32 to vector<1x128xf32>
    %59 = arith.mulf %37, %58 : vector<1x128xf32>
    %60 = arith.addf %56, %59 : vector<1x128xf32>
    %c18 = arith.constant 18 : index
    %61 = memref.load %arg1[%c18] : memref<22xf32, #tpu.memory_space<smem>>
    %62 = vector.broadcast %61 : f32 to vector<1x128xf32>
    %63 = arith.mulf %49, %62 : vector<1x128xf32>
    %64 = arith.addf %60, %63 : vector<1x128xf32>
    %c20 = arith.constant 20 : index
    %65 = memref.load %arg1[%c20] : memref<22xf32, #tpu.memory_space<smem>>
    %66 = vector.broadcast %65 : f32 to vector<1x128xf32>
    %67 = arith.addf %64, %66 : vector<1x128xf32>
    %c13 = arith.constant 13 : index
    %68 = memref.load %arg1[%c13] : memref<22xf32, #tpu.memory_space<smem>>
    %69 = vector.broadcast %68 : f32 to vector<1x128xf32>
    %70 = arith.mulf %13, %69 : vector<1x128xf32>
    %c15 = arith.constant 15 : index
    %71 = memref.load %arg1[%c15] : memref<22xf32, #tpu.memory_space<smem>>
    %72 = vector.broadcast %71 : f32 to vector<1x128xf32>
    %73 = arith.mulf %25, %72 : vector<1x128xf32>
    %74 = arith.addf %70, %73 : vector<1x128xf32>
    %c17 = arith.constant 17 : index
    %75 = memref.load %arg1[%c17] : memref<22xf32, #tpu.memory_space<smem>>
    %76 = vector.broadcast %75 : f32 to vector<1x128xf32>
    %77 = arith.mulf %37, %76 : vector<1x128xf32>
    %78 = arith.addf %74, %77 : vector<1x128xf32>
    %c19 = arith.constant 19 : index
    %79 = memref.load %arg1[%c19] : memref<22xf32, #tpu.memory_space<smem>>
    %80 = vector.broadcast %79 : f32 to vector<1x128xf32>
    %81 = arith.mulf %49, %80 : vector<1x128xf32>
    %82 = arith.addf %78, %81 : vector<1x128xf32>
    %c21 = arith.constant 21 : index
    %83 = memref.load %arg1[%c21] : memref<22xf32, #tpu.memory_space<smem>>
    %84 = vector.broadcast %83 : f32 to vector<1x128xf32>
    %85 = arith.addf %82, %84 : vector<1x128xf32>
    %86 = arith.subf %85, %67 : vector<1x128xf32>
    %cst_7 = arith.constant 0.000000e+00 : f32
    %87 = vector.broadcast %cst_7 : f32 to vector<1x128xf32>
    %88 = arith.maximumf %86, %87 : vector<1x128xf32>
    %89 = math.absf %86 : vector<1x128xf32>
    %cst_8 = arith.constant 0.000000e+00 : f32
    %90 = vector.broadcast %cst_8 : f32 to vector<1x128xf32>
    %91 = arith.subf %90, %89 : vector<1x128xf32>
    %92 = math.exp %91 : vector<1x128xf32>
    %93 = math.log1p %92 : vector<1x128xf32>
    %94 = arith.addf %88, %93 : vector<1x128xf32>
    %cst_9 = arith.constant 0.000000e+00 : f32
    %95 = vector.broadcast %cst_9 : f32 to vector<1x128xf32>
    %96 = arith.subf %95, %94 : vector<1x128xf32>
    %c0_10 = arith.constant 0 : index
    %c0_11 = arith.constant 0 : index
    %97 = vector.load %arg3[%c0_10, %c0_11] : memref<2x128xf32, #tpu.memory_space<vmem>>, vector<1x128xf32>
    tpu.vector_store %arg3[%c0_10, %c0_11], %96 {strides = array<i32>} : memref<2x128xf32, #tpu.memory_space<vmem>>, vector<1x128xf32>,
    %98 = arith.subf %86, %94 : vector<1x128xf32>
    %c1_12 = arith.constant 1 : index
    %c0_13 = arith.constant 0 : index
    %99 = vector.load %arg3[%c1_12, %c0_13] : memref<2x128xf32, #tpu.memory_space<vmem>>, vector<1x128xf32>
    tpu.vector_store %arg3[%c1_12, %c0_13], %98 {strides = array<i32>} : memref<2x128xf32, #tpu.memory_space<vmem>>, vector<1x128xf32>,
    return
  }
  func.func @transform_0(%arg0: i32, %arg1: memref<22xf32, #tpu.memory_space<smem>>) -> (i32, i32) {
    %c0_i32 = arith.constant 0 : i32
    %c0_i32_0 = arith.constant 0 : i32
    return %c0_i32, %arg0 : i32, i32
  }
  func.func @transform_1(%arg0: i32, %arg1: memref<22xf32, #tpu.memory_space<smem>>) -> (i32, i32) {
    %c0_i32 = arith.constant 0 : i32
    %c0_i32_0 = arith.constant 0 : i32
    return %c0_i32, %arg0 : i32, i32
  }
}

</mosaic_0001>

<llo_original>
// kernel: tpu_custom_call.1
$region0: #{tpu_custom_call.1}
  #allocation0 [shape = 'u32[]', space=smem, size = 0x4, offset = 0x4, fixed_abs, tag = 'smem constant byte address 0x4 - core index']
  #allocation1 [shape = 'u32[144,128]{1,0:T(1,128)}', space=vmem, size = 0x12000, scoped, tag = 'internal scratch']
  #allocation2 [shape = 's32[1]{0}', space=sflag, size = 0x4, scoped, tag = 'scoped memory for tpu_custom_call.1']
  #allocation3 [shape = 'u8[512]{0}', space=smem, size = 0x200, scoped, tag = 'prefetched SMEM operand 0']
  %s0 = inlined_call_operand.hbm [shape: f32[22], index: 0, kind: input, shape index: {}]
  %s1 = inlined_call_operand.vmem [shape: f32[2,128], index: 1, kind: input, shape index: {}]
  %s2 = inlined_call_operand.hbm [shape: f32[2,128], index: 2, kind: output, shape index: {}]
  %s3 = sld [smem:[#allocation0]]
  $region14: #{tpu_custom_call.1} parent=0
    _
  %s5 = ssub.s32 1, %s3
  %s6 = scalar_select 0, %s5, %s3
  %8 = dma.hbm_to_smem %s0, 16, [#allocation3], [#allocation2]
  %9 = dma.done [#allocation2], 16
  %10 = sfence
  $region1: #{tpu_custom_call.1} parent=0
    #allocation4 [shape = 'u8[1024]{0}', space=vmem, size = 0x400, scoped, tag = 'output window, operand 0, single buffered']
    #allocation5 [shape = 's32[1]{0}', space=sflag, size = 0x4, scoped, tag = 'scoped memory for tpu_custom_call.1']
    %11 = vsyncpa [#allocation5], 0
    // Predicated region
    $region2: #{tpu_custom_call.1} parent=1 // pred_check
      _
    $region3: #{tpu_custom_call.1} parent=1 // pred_check_branch
      %13 = sbr.rel (0) target = $region5
    $region4: #{tpu_custom_call.1} parent=1 // pred_region
      _
    $region5: #{tpu_custom_call.1} parent=1 // pred_fallthru
      _
    %v14 = vld [vmem:[%s1] sm:$0x1]
    %v15 = vld [vmem:[%s1 + $0x1] sm:$0x1]
    %s16 = sld [smem:[#allocation3]]
    %v17 = vstv %s16
    %v18 = vmul.f32 %v14, %v17
    %s19 = sld [smem:[#allocation3 + $0x4]]
    %v20 = vstv %s19
    %v21 = vmul.f32 %v15, %v20
    %v22 = vadd.f32 %v18, %v21
    %s23 = sld [smem:[#allocation3 + $0x8]]
    %v24 = vstv %s23
    %v25 = vadd.f32 %v22, %v24
    %v26 = vmax.f32 %v25, 0.0
    %s27 = sld [smem:[#allocation3 + $0x1]]
    %v28 = vstv %s27
    %v29 = vmul.f32 %v14, %v28
    %s30 = sld [smem:[#allocation3 + $0x5]]
    %v31 = vstv %s30
    %v32 = vmul.f32 %v15, %v31
    %v33 = vadd.f32 %v29, %v32
    %s34 = sld [smem:[#allocation3 + $0x9]]
    %v35 = vstv %s34
    %v36 = vadd.f32 %v33, %v35
    %v37 = vmax.f32 %v36, 0.0
    %s38 = sld [smem:[#allocation3 + $0x2]]
    %v39 = vstv %s38
    %v40 = vmul.f32 %v14, %v39
    %s41 = sld [smem:[#allocation3 + $0x6]]
    %v42 = vstv %s41
    %v43 = vmul.f32 %v15, %v42
    %v44 = vadd.f32 %v40, %v43
    %s45 = sld [smem:[#allocation3 + $0xa]]
    %v46 = vstv %s45
    %v47 = vadd.f32 %v44, %v46
    %v48 = vmax.f32 %v47, 0.0
    %s49 = sld [smem:[#allocation3 + $0x3]]
    %v50 = vstv %s49
    %v51 = vmul.f32 %v14, %v50
    %s52 = sld [smem:[#allocation3 + $0x7]]
    %v53 = vstv %s52
    %v54 = vmul.f32 %v15, %v53
    %v55 = vadd.f32 %v51, %v54
    %s56 = sld [smem:[#allocation3 + $0xb]]
    %v57 = vstv %s56
    %v58 = vadd.f32 %v55, %v57
    %v59 = vmax.f32 %v58, 0.0
    %s60 = sld [smem:[#allocation3 + $0xc]]
    %v61 = vstv %s60
    %v62 = vmul.f32 %v26, %v61
    %s63 = sld [smem:[#allocation3 + $0xe]]
    %v64 = vstv %s63
    %v65 = vmul.f32 %v37, %v64
    %v66 = vadd.f32 %v62, %v65
    %s67 = sld [smem:[#allocation3 + $0x10]]
    %v68 = vstv %s67
    %v69 = vmul.f32 %v48, %v68
    %v70 = vadd.f32 %v66, %v69
    %s71 = sld [smem:[#allocation3 + $0x12]]
    %v72 = vstv %s71
    %v73 = vmul.f32 %v59, %v72
    %v74 = vadd.f32 %v70, %v73
    %s75 = sld [smem:[#allocation3 + $0x14]]
    %v76 = vstv %s75
    %v77 = vadd.f32 %v74, %v76
    %s78 = sld [smem:[#allocation3 + $0xd]]
    %v79 = vstv %s78
    %v80 = vmul.f32 %v26, %v79
    %s81 = sld [smem:[#allocation3 + $0xf]]
    %v82 = vstv %s81
    %v83 = vmul.f32 %v37, %v82
    %v84 = vadd.f32 %v80, %v83
    %s85 = sld [smem:[#allocation3 + $0x11]]
    %v86 = vstv %s85
    %v87 = vmul.f32 %v48, %v86
    %v88 = vadd.f32 %v84, %v87
    %s89 = sld [smem:[#allocation3 + $0x13]]
    %v90 = vstv %s89
    %v91 = vmul.f32 %v59, %v90
    %v92 = vadd.f32 %v88, %v91
    %s93 = sld [smem:[#allocation3 + $0x15]]
    %v94 = vstv %s93
    %v95 = vadd.f32 %v92, %v94
    %v96 = vsub.f32 %v95, %v77
    %v97 = vmax.f32 %v96, 0.0
    %v98 = vand.u32 2147483647, %v96
    %v99 = vsub.f32 0.0, %v98
    %v100 = vmul.f32 %v99, 1.442695
    %v101 = vpow.pop %v100
    %v102 = vadd.f32 %v101, 1.0
    %v103 = vlog2.pop %v102
    %v104 = vmul.f32 %v103, 0.6931472
    %v105 = vmul.f32 -0.5, %v101
    %v106 = vadd.f32 %v105, 1.0
    %v107 = vmul.f32 %v106, %v101
    %v108 = vand.u32 2147483647, %v101
    %vm109 = vcmp.lt.f32.partialorder %v108, 0.0004427343
    %v110 = vsel %vm109, %v107, %v104
    %v111 = vadd.f32 %v97, %v110
    %v112 = vsub.f32 0.0, %v111
    %113 = vst [vmem:[#allocation4] sm:$0x1] %v112
    %v114 = vsub.f32 %v96, %v111
    %115 = vst [vmem:[#allocation4 + $0x1] sm:$0x1] %v114
    // Predicated region
    $region6: #{tpu_custom_call.1} parent=1 // pred_check
      _
    $region7: #{tpu_custom_call.1} parent=1 // pred_check_branch
      %117 = sbr.rel (0) target = $region9
    $region8: #{tpu_custom_call.1} parent=1 // pred_region
      %s119 = ssub.s32 32, 32
      %120 = vsyncadd [#allocation5], %s119
      %s122 = sshll.u32 [#allocation4], 4
      %s123 = int_to_ptr.vmem [resolvable:$true] %s122
      %125 = dma.vmem_to_hbm [thread:$0]  %s123, 32, %s2, [#allocation5]
    $region9: #{tpu_custom_call.1} parent=1 // pred_fallthru
      _
    // Predicated region
    $region10: #{tpu_custom_call.1} parent=1 // pred_check
      _
    $region11: #{tpu_custom_call.1} parent=1 // pred_check_branch
      %127 = sbr.rel (0) target = $region13
    $region12: #{tpu_custom_call.1} parent=1 // pred_region
      %128 = dma.done [#allocation5], 32
    $region13: #{tpu_custom_call.1} parent=1 // pred_fallthru
      _
    %129 = vsyncpa [#allocation5], 1

</llo_original>
